<compile_context>
chip_gen: v7x
topology: tpu7x:2x2x1
jax: 0.10.0
libtpu: 0.0.40
codegen_flags: <defaults>
</compile_context>

<pallas_src>
import functools

import jax
import jax.numpy as jnp
from jax.experimental import pallas as pl
from jax.experimental.pallas import tpu as pltpu


def _round_up(v, m):
    return ((v + m - 1) // m) * m


def _patch_embed_kernel(x_ref, w_ref, b_ref, o_ref):
    # (tm, Kp) @ (Kp, N) on the MXU with f32 accumulation, + f32 bias broadcast.
    acc = jnp.dot(x_ref[...], w_ref[...], preferred_element_type=jnp.float32)
    o_ref[...] = (acc + b_ref[...]).astype(o_ref.dtype)


def prepare_patch_embed_params(weight, bias, compute_dtype=jnp.bfloat16):
    """Conv2d weight (out, C, P, P), bias (out,) -> matmul-ready (Kp, N), (1, N).

    Hoist this out of the per-call path (compute once) so the weight
    transpose/pad/cast is not repaid on every forward.
    """
    out_ch, C, P, P2 = weight.shape
    assert P == P2, "square kernel expected"
    K = C * P * P
    Kp = _round_up(K, 128)
    # PyTorch flattens its conv weight in (C, kh, kw) order.
    w2d = weight.reshape(out_ch, K).T.astype(compute_dtype)          # (K, N)
    if Kp != K:
        w2d = jnp.pad(w2d, ((0, Kp - K), (0, 0)))                    # (Kp, N)
    b2d = bias.astype(jnp.float32).reshape(1, out_ch)                # (1, N)
    return w2d, b2d


def patch_embedding(x, weight, bias, patch_size, flatten=True,
                    compute_dtype=jnp.bfloat16, out_dtype=None,
                    tm_max=512, tm_align=256):
    """x: (B, C, H, W) float32 NCHW.

    `weight` is either the raw Conv2d weight (out_ch, C, P, P) with `bias`
    (out_ch,), or a pre-flattened (Kp, out_ch) matrix from
    prepare_patch_embed_params with `bias` the matching (1, out_ch) f32 array.

    Returns (B, num_patches, out_ch) if flatten else (B, out_ch, H//P, W//P).
    compute_dtype=float32 is a numerics-debug path (multi-pass f32 MXU, slow).
    out_dtype=None -> compute_dtype (bf16 fast path); pass jnp.float32 to
    match the PyTorch module's output dtype exactly.
    """
    B, C, H, W = x.shape
    P = patch_size
    assert H % P == 0 and W % P == 0, \
        "Input image size must be divisible by the kernel size"
    Hp, Wp = H // P, W // P
    num_patches = Hp * Wp
    K = C * P * P
    Kp = _round_up(K, 128)

    if weight.ndim == 4:                         # raw Conv2d parameters
        assert C == weight.shape[1], "Channel mismatch"
        assert weight.shape[2] == weight.shape[3] == P
        w2d, b2d = prepare_patch_embed_params(weight, bias, compute_dtype)
    else:                                        # already prepared
        w2d, b2d = weight, bias
        compute_dtype = w2d.dtype
        assert b2d.ndim == 2 and b2d.shape[0] == 1
    assert w2d.shape[0] == Kp, "prepared weight K-pad mismatch"
    N = w2d.shape[1]
    out_dtype = compute_dtype if out_dtype is None else out_dtype

    # --- patchify (plain JAX / XLA; see TODO at top) -------------------------
    # Cast FIRST so the materialized (M, K) intermediate is bf16, then
    # (B,C,Hp,P,Wp,P) -> (B,Hp,Wp,C,P,P) -> (B*num_patches, C*P*P).
    xp = x.astype(compute_dtype).reshape(B, C, Hp, P, Wp, P)
    xp = jnp.transpose(xp, (0, 2, 4, 1, 3, 5)).reshape(B * num_patches, K)
    if Kp != K:
        xp = jnp.pad(xp, ((0, 0), (0, Kp - K)))  # lane-dense contraction dim
    M = B * num_patches

    # --- M tiling: aligned, balanced, >=2 steps when it helps (v7x) ----------
    tm_align = max(8, tm_align)
    tm_max = max(tm_align, (tm_max // tm_align) * tm_align)
    if M > tm_max:
        steps = max(2, pl.cdiv(M, tm_max))
        tm = min(tm_max, _round_up(pl.cdiv(M, steps), tm_align))
    elif M >= 2 * tm_align:
        # split into two near-equal tiles so both v7x TensorCores get work
        tm = _round_up(pl.cdiv(M, 2), max(tm_align // 2, 8))
    else:
        tm = M                                   # single full-dim block (legal)

    in_b = jnp.dtype(compute_dtype).itemsize
    out_b = jnp.dtype(out_dtype).itemsize

    def vmem_need(t):  # double-buffered x/out streams + resident weight/bias
        return 2 * t * Kp * in_b + 2 * t * N * out_b + 2 * Kp * N * in_b + 2 * N * 4

    vmem_cap = 48 * 1024 * 1024                  # safe on v7x's 64 MiB VMEM
    while tm > tm_align and vmem_need(tm) > vmem_cap - (4 << 20):
        tm = max(tm_align, tm - tm_align)
    grid_m = pl.cdiv(M, tm)
    vmem_limit = int(min(vmem_cap, max(32 * 1024 * 1024, 2 * vmem_need(tm))))

    cost = pl.CostEstimate(
        flops=2 * M * Kp * N,
        transcendentals=0,
        bytes_accessed=(M * Kp * in_b            # activations in
                        + Kp * N * in_b          # weight in (resident)
                        + N * 4                  # bias in
                        + M * N * out_b),        # output out
    )

    out2d = pl.pallas_call(
        _patch_embed_kernel,
        out_shape=jax.ShapeDtypeStruct((M, N), out_dtype),
        grid_spec=pltpu.PrefetchScalarGridSpec(
            num_scalar_prefetch=0,
            grid=(grid_m,),
            in_specs=[
                pl.BlockSpec((tm, Kp), lambda i: (i, 0)),   # streamed x tile
                pl.BlockSpec((Kp, N), lambda i: (0, 0)),    # weight, resident
                pl.BlockSpec((1, N), lambda i: (0, 0)),     # bias, resident
            ],
            out_specs=pl.BlockSpec((tm, N), lambda i: (i, 0)),
        ),
        compiler_params=pltpu.CompilerParams(
            dimension_semantics=("parallel",),   # shard M across TCs (v7x)
            vmem_limit_bytes=vmem_limit,
        ),
        cost_estimate=cost,
    )(xp, w2d, b2d)

    out = out2d.reshape(B, num_patches, N)
    if not flatten:
        # Undo the flatten/transpose: (B, num_patches, out) -> (B, out, Hp, Wp)
        out = jnp.transpose(out, (0, 2, 1)).reshape(B, N, Hp, Wp)
    return out


if __name__ == "__main__":
    # Small shapes consistent with the module: B=2, C=4, H=W=16, patch=8, out=32
    B, C, H, W = 2, 4, 16, 16
    P = 8
    OUT = 32

    key = jax.random.PRNGKey(0)
    kx, kw, kb = jax.random.split(key, 3)
    x = jax.random.normal(kx, (B, C, H, W), dtype=jnp.float32)
    # Deterministic synthetic parameters (Conv2d shapes: (out, in, P, P), (out,))
    weight = jax.random.normal(kw, (OUT, C, P, P), dtype=jnp.float32) * 0.02
    bias = jax.random.normal(kb, (OUT,), dtype=jnp.float32) * 0.02

    # Pure-JAX reference (lax conv), matching the PyTorch module.
    ref = jax.lax.conv_general_dilated(
        x, weight, window_strides=(P, P), padding="VALID",
        dimension_numbers=("NCHW", "OIHW", "NCHW"))
    ref = ref + bias.reshape(1, OUT, 1, 1)
    ref_flat = jnp.transpose(ref.reshape(B, OUT, -1), (0, 2, 1))

    n_patches = (H // P) * (W // P)

    # 1) Numerics-debug path: f32 MXU, f32 output -> tight tolerance.
    out_f32 = patch_embedding(x, weight, bias, patch_size=P,
                              compute_dtype=jnp.float32, out_dtype=jnp.float32)
    out_f32 = jax.block_until_ready(out_f32)
    assert out_f32.shape == (B, n_patches, OUT)
    assert out_f32.dtype == jnp.float32
    assert jnp.allclose(out_f32, ref_flat, atol=1e-4, rtol=1e-4)

    # 2) Default fast path (bf16 MXU inputs + bf16 output, f32 accumulation),
    #    jitted so the bf16 cast fuses into the patchify transpose.
    fast = jax.jit(functools.partial(patch_embedding, patch_size=P))
    out_bf16 = jax.block_until_ready(fast(x, weight, bias))
    assert out_bf16.shape == (B, n_patches, OUT)
    assert out_bf16.dtype == jnp.bfloat16
    assert jnp.allclose(out_bf16.astype(jnp.float32), ref_flat,
                        atol=3e-2, rtol=3e-2)

    # 3) Hoisted-parameter path (weight prep done once, outside the call).
    w2d, b2d = prepare_patch_embed_params(weight, bias)
    out_prep = jax.block_until_ready(patch_embedding(x, w2d, b2d, patch_size=P))
    assert out_prep.shape == (B, n_patches, OUT)
    assert jnp.allclose(out_prep.astype(jnp.float32),
                        out_bf16.astype(jnp.float32), atol=1e-2, rtol=1e-2)

    # 4) flatten=False path: (B, out_ch, Hp, Wp), matches the conv output.
    out_nchw = jax.block_until_ready(
        patch_embedding(x, weight, bias, patch_size=P, flatten=False))
    assert out_nchw.shape == (B, OUT, H // P, W // P)
    assert jnp.allclose(out_nchw.astype(jnp.float32), ref, atol=3e-2, rtol=3e-2)

    print("KERNEL_OK")
</pallas_src>

<mosaic_0001>
module attributes {stable_mosaic.version = 11 : i64} {
  func.func @_patch_embed_kernel(%arg0: i32, %arg1: memref<8x256xf32, #tpu.memory_space<vmem>>, %arg2: memref<256x32xf32, #tpu.memory_space<vmem>>, %arg3: memref<1x32xf32, #tpu.memory_space<vmem>>, %arg4: memref<8x32xf32, #tpu.memory_space<vmem>>) attributes {dimension_semantics = [#tpu.dimension_semantics<parallel>], iteration_bounds = array<i64: 1>, scalar_prefetch = 0 : i64, scratch_operands = 0 : i64, tpu.core_type = #tpu.core_type<tc>, window_params = [{transform_indices = @transform_0, window_bounds = array<i64: 8, 256>}, {pipeline_mode = #tpu.pipeline_mode<synchronous>, transform_indices = @transform_1, window_bounds = array<i64: 256, 32>}, {pipeline_mode = #tpu.pipeline_mode<synchronous>, transform_indices = @transform_2, window_bounds = array<i64: 1, 32>}, {transform_indices = @transform_3, window_bounds = array<i64: 8, 32>}]} {
    %c0 = arith.constant 0 : index
    %c0_0 = arith.constant 0 : index
    %0 = vector.load %arg1[%c0, %c0_0] : memref<8x256xf32, #tpu.memory_space<vmem>>, vector<8x256xf32>
    %c0_1 = arith.constant 0 : index
    %c0_2 = arith.constant 0 : index
    %1 = vector.load %arg2[%c0_1, %c0_2] : memref<256x32xf32, #tpu.memory_space<vmem>>, vector<256x32xf32>
    %cst = arith.constant dense<0.000000e+00> : vector<8x32xf32>
    %2 = tpu.matmul %0, %1, %cst {dimension_numbers = #tpu.dot_dimension_numbers<[1], [0], [0], [1], [0, 0, 1, 1], [], []>} : vector<8x256xf32>, vector<256x32xf32>, vector<8x32xf32> -> vector<8x32xf32>
    %c0_3 = arith.constant 0 : index
    %c0_4 = arith.constant 0 : index
    %3 = vector.load %arg3[%c0_3, %c0_4] : memref<1x32xf32, #tpu.memory_space<vmem>>, vector<1x32xf32>
    %4 = vector.broadcast %3 : vector<1x32xf32> to vector<8x32xf32>
    %5 = arith.addf %2, %4 : vector<8x32xf32>
    %c0_5 = arith.constant 0 : index
    %c0_6 = arith.constant 0 : index
    %6 = vector.load %arg4[%c0_5, %c0_6] : memref<8x32xf32, #tpu.memory_space<vmem>>, vector<8x32xf32>
    tpu.vector_store %arg4[%c0_5, %c0_6], %5 {strides = array<i32>} : memref<8x32xf32, #tpu.memory_space<vmem>>, vector<8x32xf32>,
    return
  }
  func.func @transform_0(%arg0: i32) -> (i32, i32) {
    %c0_i32 = arith.constant 0 : i32
    %c0_i32_0 = arith.constant 0 : i32
    return %arg0, %c0_i32 : i32, i32
  }
  func.func @transform_1(%arg0: i32) -> (i32, i32) {
    %c0_i32 = arith.constant 0 : i32
    %c0_i32_0 = arith.constant 0 : i32
    %c0_i32_1 = arith.constant 0 : i32
    return %c0_i32, %c0_i32_0 : i32, i32
  }
  func.func @transform_2(%arg0: i32) -> (i32, i32) {
    %c0_i32 = arith.constant 0 : i32
    %c0_i32_0 = arith.constant 0 : i32
    %c0_i32_1 = arith.constant 0 : i32
    return %c0_i32, %c0_i32_0 : i32, i32
  }
  func.func @transform_3(%arg0: i32) -> (i32, i32) {
    %c0_i32 = arith.constant 0 : i32
    %c0_i32_0 = arith.constant 0 : i32
    return %arg0, %c0_i32 : i32, i32
  }
}

</mosaic_0001>

<llo_original>
// kernel: tpu_custom_call.1
$region0: #{tpu_custom_call.1}
  #allocation0 [shape = 'u32[]', space=smem, size = 0x4, offset = 0x4, fixed_abs, tag = 'smem constant byte address 0x4 - core index']
  #allocation1 [shape = 'u32[144,128]{1,0:T(1,128)}', space=vmem, size = 0x12000, scoped, tag = 'internal scratch']
  %s0 = inlined_call_operand.vmem [shape: f32[8,256], index: 0, kind: input, shape index: {}]
  %s1 = inlined_call_operand.vmem [shape: f32[256,32], index: 1, kind: input, shape index: {}]
  %s2 = inlined_call_operand.vmem [shape: f32[1,32], index: 2, kind: input, shape index: {}]
  %s3 = inlined_call_operand.hbm [shape: f32[8,32], index: 3, kind: output, shape index: {}]
  %s4 = sld [smem:[#allocation0]]
  $region22: #{tpu_custom_call.1} parent=0
    _
  %s6 = ssub.s32 1, %s4
  %s7 = scalar_select 0, %s6, %s4
  $region1: #{tpu_custom_call.1} parent=0
    #allocation2 [shape = 'u8[4096]{0}', space=vmem, size = 0x1000, scoped, tag = 'output window, operand 0, single buffered']
    #allocation3 [shape = 's32[1]{0}', space=sflag, size = 0x4, scoped, tag = 'scoped memory for tpu_custom_call.1']
    %8 = vsyncpa [#allocation3], 0
    // Predicated region
    $region2: #{tpu_custom_call.1} parent=1 // pred_check
      _
    $region3: #{tpu_custom_call.1} parent=1 // pred_check_branch
      %10 = sbr.rel (0) target = $region5
    $region4: #{tpu_custom_call.1} parent=1 // pred_region
      _
    $region5: #{tpu_custom_call.1} parent=1 // pred_fallthru
      _
    // Predicated region
    $region6: #{tpu_custom_call.1} parent=1 // pred_check
      _
    $region7: #{tpu_custom_call.1} parent=1 // pred_check_branch
      %12 = sbr.rel (0) target = $region9
    $region8: #{tpu_custom_call.1} parent=1 // pred_region
      _
    $region9: #{tpu_custom_call.1} parent=1 // pred_fallthru
      _
    // Predicated region
    $region10: #{tpu_custom_call.1} parent=1 // pred_check
      _
    $region11: #{tpu_custom_call.1} parent=1 // pred_check_branch
      %14 = sbr.rel (0) target = $region13
    $region12: #{tpu_custom_call.1} parent=1 // pred_region
      _
    $region13: #{tpu_custom_call.1} parent=1 // pred_fallthru
      _
    %v15 = vld [vmem:[%s0] sm:$0xff]
    %v16 = vld [vmem:[%s0 + $0x8] sm:$0xff]
    %v17 = vld [vmem:[%s1] sm:$0xff]
    %v18 = vld [vmem:[%s1 + $0x8] sm:$0xff]
    %v19 = vld [vmem:[%s1 + $0x10] sm:$0xff]
    %v20 = vld [vmem:[%s1 + $0x18] sm:$0xff]
    %v21 = vld [vmem:[%s1 + $0x20] sm:$0xff]
    %v22 = vld [vmem:[%s1 + $0x28] sm:$0xff]
    %v23 = vld [vmem:[%s1 + $0x30] sm:$0xff]
    %v24 = vld [vmem:[%s1 + $0x38] sm:$0xff]
    %v25 = vld [vmem:[%s1 + $0x40] sm:$0xff]
    %v26 = vld [vmem:[%s1 + $0x48] sm:$0xff]
    %v27 = vld [vmem:[%s1 + $0x50] sm:$0xff]
    %v28 = vld [vmem:[%s1 + $0x58] sm:$0xff]
    %v29 = vld [vmem:[%s1 + $0x60] sm:$0xff]
    %v30 = vld [vmem:[%s1 + $0x68] sm:$0xff]
    %v31 = vld [vmem:[%s1 + $0x70] sm:$0xff]
    %v32 = vld [vmem:[%s1 + $0x78] sm:$0xff]
    %v33 = vld [vmem:[%s1 + $0x80] sm:$0xff]
    %v34 = vld [vmem:[%s1 + $0x88] sm:$0xff]
    %v35 = vld [vmem:[%s1 + $0x90] sm:$0xff]
    %v36 = vld [vmem:[%s1 + $0x98] sm:$0xff]
    %v37 = vld [vmem:[%s1 + $0xa0] sm:$0xff]
    %v38 = vld [vmem:[%s1 + $0xa8] sm:$0xff]
    %v39 = vld [vmem:[%s1 + $0xb0] sm:$0xff]
    %v40 = vld [vmem:[%s1 + $0xb8] sm:$0xff]
    %v41 = vld [vmem:[%s1 + $0xc0] sm:$0xff]
    %v42 = vld [vmem:[%s1 + $0xc8] sm:$0xff]
    %v43 = vld [vmem:[%s1 + $0xd0] sm:$0xff]
    %v44 = vld [vmem:[%s1 + $0xd8] sm:$0xff]
    %v45 = vld [vmem:[%s1 + $0xe0] sm:$0xff]
    %v46 = vld [vmem:[%s1 + $0xe8] sm:$0xff]
    %v47 = vld [vmem:[%s1 + $0xf0] sm:$0xff]
    %v48 = vld [vmem:[%s1 + $0xf8] sm:$0xff]
    %v49 = vld [vmem:[%s2] sm:$0x1]
    %v51 = vlaneseq
    %v52 = vshrl.u32 %v51, 7
    %v53 = vsub.s32 0, %v52
    %v54 = vrot.slane %v49, %v53
    %56 = vmatprep.subr.mxu0 0.0
    %57 = vmatpush1.msra.mxu0 %v17
    %58 = vmatprep.subr.mxu0 0.0
    %59 = vmatpush1.msra.mxu0 %v18
    %60 = vmatprep.subr.mxu0 0.0
    %61 = vmatpush1.msra.mxu0 %v19
    %62 = vmatprep.subr.mxu0 0.0
    %63 = vmatpush1.msra.mxu0 %v20
    %64 = vmatprep.subr.mxu0 0.0
    %65 = vmatpush1.msra.mxu0 %v21
    %66 = vmatprep.subr.mxu0 0.0
    %67 = vmatpush1.msra.mxu0 %v22
    %68 = vmatprep.subr.mxu0 0.0
    %69 = vmatpush1.msra.mxu0 %v23
    %70 = vmatprep.subr.mxu0 0.0
    %71 = vmatpush1.msra.mxu0 %v24
    %72 = vmatprep.subr.mxu0 0.0
    %73 = vmatpush1.msra.mxu0 %v25
    %74 = vmatprep.subr.mxu0 0.0
    %75 = vmatpush1.msra.mxu0 %v26
    %76 = vmatprep.subr.mxu0 0.0
    %77 = vmatpush1.msra.mxu0 %v27
    %78 = vmatprep.subr.mxu0 0.0
    %79 = vmatpush1.msra.mxu0 %v28
    %80 = vmatprep.subr.mxu0 0.0
    %81 = vmatpush1.msra.mxu0 %v29
    %82 = vmatprep.subr.mxu0 0.0
    %83 = vmatpush1.msra.mxu0 %v30
    %84 = vmatprep.subr.mxu0 0.0
    %85 = vmatpush1.msra.mxu0 %v31
    %86 = vmatprep.subr.mxu0 0.0
    %87 = vmatpush1.msra.mxu0 %v32
    %88 = vmatprep.subr.mxu0 0.0
    %89 = vmatpush1.msra.mxu0 %v33
    %90 = vmatprep.subr.mxu0 0.0
    %91 = vmatpush1.msra.mxu0 %v34
    %92 = vmatprep.subr.mxu0 0.0
    %93 = vmatpush1.msra.mxu0 %v35
    %94 = vmatprep.subr.mxu0 0.0
    %95 = vmatpush1.msra.mxu0 %v36
    %96 = vmatprep.subr.mxu0 0.0
    %97 = vmatpush1.msra.mxu0 %v37
    %98 = vmatprep.subr.mxu0 0.0
    %99 = vmatpush1.msra.mxu0 %v38
    %100 = vmatprep.subr.mxu0 0.0
    %101 = vmatpush1.msra.mxu0 %v39
    %102 = vmatprep.subr.mxu0 0.0
    %103 = vmatpush1.msra.mxu0 %v40
    %104 = vmatprep.subr.mxu0 0.0
    %105 = vmatpush1.msra.mxu0 %v41
    %106 = vmatprep.subr.mxu0 0.0
    %107 = vmatpush1.msra.mxu0 %v42
    %108 = vmatprep.subr.mxu0 0.0
    %109 = vmatpush1.msra.mxu0 %v43
    %110 = vmatprep.subr.mxu0 0.0
    %111 = vmatpush1.msra.mxu0 %v44
    %112 = vmatprep.subr.mxu0 0.0
    %113 = vmatpush1.msra.mxu0 %v45
    %114 = vmatprep.subr.mxu0 0.0
    %115 = vmatpush1.msra.mxu0 %v46
    %116 = vmatprep.subr.mxu0 0.0
    %117 = vmatpush1.msra.mxu0 %v47
    %118 = vmatprep.subr.mxu0 0.0
    %119 = vmatpush1.msra.mxu0 %v48
    %120 = vmatprep.mubr.f32.mxu0 %v16
    %121 = vmatmul.mubr.f32.gmra.mrb[0].mxu0 %v15
    %v122 = vpop.f32.mrb[0].mxu0
    %v123 = vadd.f32 %v54, %v122
    %v124 = vpop.f32.mrb[0].mxu0
    %125 = vdwg.mxu0
    %vm126 = vcmask 261120
    %127 = vst.msk [vmem:[#allocation2] sm:$0xff] %vm126, %v123
    // Predicated region
    $region14: #{tpu_custom_call.1} parent=1 // pred_check
      _
    $region15: #{tpu_custom_call.1} parent=1 // pred_check_branch
      %129 = sbr.rel (0) target = $region17
    $region16: #{tpu_custom_call.1} parent=1 // pred_region
      %s131 = ssub.s32 128, 128
      %132 = vsyncadd [#allocation3], %s131
      %s134 = sshll.u32 [#allocation2], 4
      %s135 = int_to_ptr.vmem [resolvable:$true] %s134
      %137 = dma.vmem_to_hbm [thread:$0]  %s135, 128, %s3, [#allocation3]
    $region17: #{tpu_custom_call.1} parent=1 // pred_fallthru
      _
    // Predicated region
    $region18: #{tpu_custom_call.1} parent=1 // pred_check
      _
    $region19: #{tpu_custom_call.1} parent=1 // pred_check_branch
      %139 = sbr.rel (0) target = $region21
    $region20: #{tpu_custom_call.1} parent=1 // pred_region
      %140 = dma.done [#allocation3], 128
    $region21: #{tpu_custom_call.1} parent=1 // pred_fallthru
      _
    %141 = vsyncpa [#allocation3], 1

</llo_original>
